<compile_context>
chip_gen: v5e
topology: v5e:2x2
jax: 0.10.0
libtpu: 0.0.40
codegen_flags: <defaults>
</compile_context>

<pallas_src>
import jax
import jax.numpy as jnp
from jax.experimental import pallas as pl
from jax.experimental.pallas import tpu as pltpu


def _side_output_kernel(xc_ref, w1_ref, b1_ref, w2_ref, o_ref):
    # xc_ref: (K, T)   im2col columns, K = 9*Cin, T = lane-dense column tile
    # w1_ref: (C, K)   3x3 conv weights, reduction axis flattened as (ci, ky, kx)
    # b1_ref: (C, 1)   conv1 bias
    # w2_ref: (1, C)   1x1 conv weights (no bias)
    # o_ref : (1, T)   lane-dense output tile
    acc = jnp.dot(w1_ref[...], xc_ref[...],
                  preferred_element_type=jnp.float32)          # (C, T)
    acc = jnp.maximum(acc + b1_ref[...], 0.0)                  # bias + ReLU
    out = jnp.dot(w2_ref[...], acc,
                  preferred_element_type=jnp.float32)          # (1, T)
    o_ref[...] = out.astype(o_ref.dtype)


def _pick_col_tile(total, cap=8192):
    """Largest multiple-of-128 tile <= cap that divides `total` and yields at
    least 2 grid blocks (so both v7x TensorCores get work). Falls back to a
    single full block when no such tile exists."""
    if total % 128 != 0:
        return total
    best = None
    t = 128
    while t <= min(total, cap):
        if total % t == 0 and total // t >= 2:
            best = t
        t += 128
    return best if best is not None else total


def side_output_forward(x_nchw, w1_oihw, b1, w2_oihw):
    """x_nchw: (N, Cin, H, W). Returns (N, 1, H, W), matching PyTorch SideOutput."""
    N, Cin, H, W = x_nchw.shape
    C = w1_oihw.shape[0]          # num_class
    K = 9 * Cin
    T_total = N * H * W

    # --- wrapper-side im2col + layout (XLA glue) --------------------------
    x_pad = jnp.pad(x_nchw, ((0, 0), (0, 0), (1, 1), (1, 1)))  # (N, Cin, H+2, W+2)
    taps = [x_pad[:, :, ky:ky + H, kx:kx + W]                   # tap = ky*3 + kx
            for ky in range(3) for kx in range(3)]              # each (N, Cin, H, W)
    x_col = jnp.stack(taps, axis=0)                             # (9, N, Cin, H, W)
    x_col = x_col.transpose(2, 0, 1, 3, 4).reshape(K, T_total)  # (Cin*9, N*H*W)

    # conv1 weight (C, Cin, 3, 3) -> (C, Cin*9); reduction order (ci, ky, kx)
    w1_mat = w1_oihw.reshape(C, K)
    b1_col = b1.reshape(C, 1)
    # conv2 weight (1, C, 1, 1) -> (1, C)
    w2_mat = w2_oihw.reshape(1, C)

    col_tile = _pick_col_tile(T_total)
    grid = (T_total // col_tile,)

    out_flat = pl.pallas_call(
        _side_output_kernel,
        out_shape=jax.ShapeDtypeStruct((1, T_total), x_nchw.dtype),
        grid_spec=pltpu.PrefetchScalarGridSpec(
            num_scalar_prefetch=0,
            grid=grid,
            in_specs=[
                pl.BlockSpec((K, col_tile), lambda i: (0, i)),
                pl.BlockSpec((C, K), lambda i: (0, 0)),
                pl.BlockSpec((C, 1), lambda i: (0, 0)),
                pl.BlockSpec((1, C), lambda i: (0, 0)),
            ],
            out_specs=pl.BlockSpec((1, col_tile), lambda i: (0, i)),
        ),
        compiler_params=pltpu.CompilerParams(
            dimension_semantics=("parallel",)),
    )(x_col, w1_mat, b1_col, w2_mat)

    # back to NCHW: (N, 1, H, W)
    return out_flat.reshape(N, H, W)[:, None, :, :]


def _reference_forward(x_nchw, w1_oihw, b1, w2_oihw):
    """Pure-JAX reference using lax.conv (NCHW), mirroring the PyTorch module."""
    y = jax.lax.conv_general_dilated(
        x_nchw, w1_oihw, window_strides=(1, 1), padding=((1, 1), (1, 1)),
        dimension_numbers=("NCHW", "OIHW", "NCHW"))
    y = y + b1.reshape(1, -1, 1, 1)
    y = jnp.maximum(y, 0.0)
    y = jax.lax.conv_general_dilated(
        y, w2_oihw, window_strides=(1, 1), padding=((0, 0), (0, 0)),
        dimension_numbers=("NCHW", "OIHW", "NCHW"))
    return y


if __name__ == "__main__":
    # Small shapes consistent with the module: num_output=4 input channels,
    # num_class=19, batch=2, spatial 16x16.
    N, Cin, H, W = 2, 4, 16, 16
    num_class = 19

    key = jax.random.PRNGKey(0)
    k_x, k_w1, k_b1, k_w2 = jax.random.split(key, 4)

    x = jax.random.normal(k_x, (N, Cin, H, W), dtype=jnp.float32)
    w1 = 0.1 * jax.random.normal(k_w1, (num_class, Cin, 3, 3), dtype=jnp.float32)
    b1 = 0.1 * jax.random.normal(k_b1, (num_class,), dtype=jnp.float32)
    w2 = 0.1 * jax.random.normal(k_w2, (1, num_class, 1, 1), dtype=jnp.float32)

    out = side_output_forward(x, w1, b1, w2)
    out = jax.block_until_ready(out)

    ref = _reference_forward(x, w1, b1, w2)
    assert out.shape == (N, 1, H, W)
    assert jnp.allclose(out, ref, atol=1e-4, rtol=1e-4), "mismatch vs JAX reference"

    print("KERNEL_OK")
</pallas_src>

<mosaic_0001>
module attributes {stable_mosaic.version = 11 : i64} {
  func.func @_side_output_kernel(%arg0: i32, %arg1: memref<36x256xf32, #tpu.memory_space<vmem>>, %arg2: memref<19x36xf32, #tpu.memory_space<vmem>>, %arg3: memref<19x1xf32, #tpu.memory_space<vmem>>, %arg4: memref<1x19xf32, #tpu.memory_space<vmem>>, %arg5: memref<1x256xf32, #tpu.memory_space<vmem>>) attributes {dimension_semantics = [#tpu.dimension_semantics<parallel>], iteration_bounds = array<i64: 2>, scalar_prefetch = 0 : i64, scratch_operands = 0 : i64, tpu.core_type = #tpu.core_type<tc>, window_params = [{transform_indices = @transform_0, window_bounds = array<i64: 36, 256>}, {pipeline_mode = #tpu.pipeline_mode<synchronous>, transform_indices = @transform_1, window_bounds = array<i64: 19, 36>}, {pipeline_mode = #tpu.pipeline_mode<synchronous>, transform_indices = @transform_2, window_bounds = array<i64: 19, 1>}, {pipeline_mode = #tpu.pipeline_mode<synchronous>, transform_indices = @transform_3, window_bounds = array<i64: 1, 19>}, {transform_indices = @transform_4, window_bounds = array<i64: 1, 256>}]} {
    %c0 = arith.constant 0 : index
    %c0_0 = arith.constant 0 : index
    %0 = vector.load %arg2[%c0, %c0_0] : memref<19x36xf32, #tpu.memory_space<vmem>>, vector<19x36xf32>
    %c0_1 = arith.constant 0 : index
    %c0_2 = arith.constant 0 : index
    %1 = vector.load %arg1[%c0_1, %c0_2] : memref<36x256xf32, #tpu.memory_space<vmem>>, vector<36x256xf32>
    %cst = arith.constant dense<0.000000e+00> : vector<19x256xf32>
    %2 = tpu.matmul %0, %1, %cst {dimension_numbers = #tpu.dot_dimension_numbers<[1], [0], [0], [1], [0, 0, 1, 1], [], []>} : vector<19x36xf32>, vector<36x256xf32>, vector<19x256xf32> -> vector<19x256xf32>
    %c0_3 = arith.constant 0 : index
    %c0_4 = arith.constant 0 : index
    %3 = vector.load %arg3[%c0_3, %c0_4] : memref<19x1xf32, #tpu.memory_space<vmem>>, vector<19x1xf32>
    %4 = vector.broadcast %3 : vector<19x1xf32> to vector<19x256xf32>
    %5 = arith.addf %2, %4 : vector<19x256xf32>
    %cst_5 = arith.constant 0.000000e+00 : f32
    %6 = vector.broadcast %cst_5 : f32 to vector<19x256xf32>
    %7 = arith.maximumf %5, %6 : vector<19x256xf32>
    %c0_6 = arith.constant 0 : index
    %c0_7 = arith.constant 0 : index
    %8 = vector.load %arg4[%c0_6, %c0_7] : memref<1x19xf32, #tpu.memory_space<vmem>>, vector<1x19xf32>
    %cst_8 = arith.constant dense<0.000000e+00> : vector<1x256xf32>
    %9 = tpu.matmul %8, %7, %cst_8 {dimension_numbers = #tpu.dot_dimension_numbers<[1], [0], [0], [1], [0, 0, 1, 1], [], []>} : vector<1x19xf32>, vector<19x256xf32>, vector<1x256xf32> -> vector<1x256xf32>
    %c0_9 = arith.constant 0 : index
    %c0_10 = arith.constant 0 : index
    %10 = vector.load %arg5[%c0_9, %c0_10] : memref<1x256xf32, #tpu.memory_space<vmem>>, vector<1x256xf32>
    tpu.vector_store %arg5[%c0_9, %c0_10], %9 {strides = array<i32>} : memref<1x256xf32, #tpu.memory_space<vmem>>, vector<1x256xf32>,
    return
  }
  func.func @transform_0(%arg0: i32) -> (i32, i32) {
    %c0_i32 = arith.constant 0 : i32
    %c0_i32_0 = arith.constant 0 : i32
    return %c0_i32, %arg0 : i32, i32
  }
  func.func @transform_1(%arg0: i32) -> (i32, i32) {
    %c0_i32 = arith.constant 0 : i32
    %c0_i32_0 = arith.constant 0 : i32
    %c0_i32_1 = arith.constant 0 : i32
    return %c0_i32, %c0_i32_0 : i32, i32
  }
  func.func @transform_2(%arg0: i32) -> (i32, i32) {
    %c0_i32 = arith.constant 0 : i32
    %c0_i32_0 = arith.constant 0 : i32
    %c0_i32_1 = arith.constant 0 : i32
    return %c0_i32, %c0_i32_0 : i32, i32
  }
  func.func @transform_3(%arg0: i32) -> (i32, i32) {
    %c0_i32 = arith.constant 0 : i32
    %c0_i32_0 = arith.constant 0 : i32
    %c0_i32_1 = arith.constant 0 : i32
    return %c0_i32, %c0_i32_0 : i32, i32
  }
  func.func @transform_4(%arg0: i32) -> (i32, i32) {
    %c0_i32 = arith.constant 0 : i32
    %c0_i32_0 = arith.constant 0 : i32
    return %c0_i32, %arg0 : i32, i32
  }
}

</mosaic_0001>

<llo_original>
// kernel: tpu_custom_call.1
$region0: #{tpu_custom_call.1}
  #allocation0 [shape = 'u32[]', space=smem, size = 0x4, offset = 0x4, fixed_abs, tag = 'smem constant byte address 0x4 - core index']
  #allocation1 [shape = 'u32[72,128]{1,0:T(1,128)}', space=vmem, size = 0x9000, scoped, tag = 'internal scratch']
  %s0 = inlined_call_operand.hbm [shape: f32[36,512], index: 0, kind: input, shape index: {}]
  %s1 = inlined_call_operand.vmem [shape: f32[19,36], index: 1, kind: input, shape index: {}]
  %s2 = inlined_call_operand.vmem [shape: f32[19,1], index: 2, kind: input, shape index: {}]
  %s3 = inlined_call_operand.vmem [shape: f32[1,19], index: 3, kind: input, shape index: {}]
  %s4 = inlined_call_operand.hbm [shape: f32[1,512], index: 4, kind: output, shape index: {}]
  %s5 = sld [smem:[#allocation0]]
  $region53: #{tpu_custom_call.1} parent=0
    _
  %s7 = ssub.s32 1, %s5
  %s8 = scalar_select 0, %s7, %s5
  $region1: #{tpu_custom_call.1} parent=0
    #allocation2 [shape = 'u8[81920]{0}', space=vmem, size = 0x14000, scoped, tag = 'input window, operand 0']
    #allocation3 [shape = 's32[2]{0}', space=sflag, size = 0x8, scoped, tag = 'scoped memory for tpu_custom_call.1']
    #allocation4 [shape = 's32[2]{0}', space=sflag, size = 0x8, scoped, tag = 'scoped memory for tpu_custom_call.1']
    #allocation5 [shape = 'u8[2048]{0}', space=vmem, size = 0x800, scoped, tag = 'output window, operand 0']
    %9 = vsyncpa [#allocation3], 0
    %s10 = scalar_lea.sflag [#allocation3], 1
    %11 = vsyncpa %s10, 0
    %12 = vsyncpa [#allocation4], 0
    %s13 = scalar_lea.sflag [#allocation4], 1
    %14 = vsyncpa %s13, 0
    loop: start=0, step=1, limit=4
    $region2: #{tpu_custom_call.1} parent=1 // loop_pre_header
      _
    $region3: #{tpu_custom_call.1} parent=1 // loop_header
      %s16 = sphi 0, %s20
      %p17 = scmp.ge.s32.totalorder %s16, 4
      %s26 = sphi 0, %s28
      %s29 = sphi 0, %s26
      %s30 = sphi 0, %s29
      %s46 = sphi 0, %s30
      %s50 = sphi 0, %s50
      %s52 = sphi 0, %s50
      %s53 = sphi 0, %s52
      %s67 = sphi 0, %s53
      %s71 = sphi 0, %s71
      %s73 = sphi 0, %s71
      %s74 = sphi 0, %s73
      %s88 = sphi 0, %s74
      %s92 = sphi 0, %s92
      %s94 = sphi 0, %s92
      %s95 = sphi 0, %s94
      %s109 = sphi 0, %s95
      %s115 = sphi 0, %s117
      %s118 = sphi 0, %s115
      %s119 = sphi 0, %s118
      %s135 = sphi 0, %s119
    $region4: #{tpu_custom_call.1} parent=1 // loop_header_branch
      %19 = sbr.rel (%p17) target = $region8
    $region5: #{tpu_custom_call.1} parent=1 // loop_body
      %s21 = ssub.s32 %s16, 1
      %s22 = ssub.s32 %s16, 2
      %s23 = sadd.s32 %s16, 1
      %s24 = ssub.s32 %s16, %s23
      %p25 = scmp.eq.s32.totalorder %s24, 0
      %s27 = sadd.s32 %s26, 1
      %s28 = scalar_select %p25, %s26, %s27
      %p31 = pneg %p25
      %p32 = scmp.eq.s32.totalorder %s16, 1
      %p33 = por %p31, %p32
      %p34 = scmp.ne.s32.totalorder %s26, %s29
      %p35 = scmp.eq.s32.totalorder %s16, 0
      %p36 = por %p34, %p35
      %p37 = scmp.ne.s32.totalorder %s26, %s29
      %p38 = scmp.eq.s32.totalorder %s21, 1
      %p39 = por %p37, %p38
      %p40 = scmp.ne.s32.totalorder %s29, %s30
      %p41 = scmp.eq.s32.totalorder %s21, 0
      %p42 = por %p40, %p41
      %p43 = scmp.ne.s32.totalorder %s29, %s30
      %p44 = scmp.eq.s32.totalorder %s22, 1
      %p45 = por %p43, %p44
      %p47 = scmp.ne.s32.totalorder %s30, %s46
      %p48 = scmp.eq.s32.totalorder %s22, 0
      %p49 = por %p47, %p48
      %s51 = sadd.s32 %s50, 1
      %p54 = scmp.eq.s32.totalorder %s16, 1
      %p55 = scmp.ne.s32.totalorder %s50, %s52
      %p56 = scmp.eq.s32.totalorder %s16, 0
      %p57 = por %p55, %p56
      %p58 = scmp.ne.s32.totalorder %s50, %s52
      %p59 = scmp.eq.s32.totalorder %s21, 1
      %p60 = por %p58, %p59
      %p61 = scmp.ne.s32.totalorder %s52, %s53
      %p62 = scmp.eq.s32.totalorder %s21, 0
      %p63 = por %p61, %p62
      %p64 = scmp.ne.s32.totalorder %s52, %s53
      %p65 = scmp.eq.s32.totalorder %s22, 1
      %p66 = por %p64, %p65
      %p68 = scmp.ne.s32.totalorder %s53, %s67
      %p69 = scmp.eq.s32.totalorder %s22, 0
      %p70 = por %p68, %p69
      %s72 = sadd.s32 %s71, 1
      %p75 = scmp.eq.s32.totalorder %s16, 1
      %p76 = scmp.ne.s32.totalorder %s71, %s73
      %p77 = scmp.eq.s32.totalorder %s16, 0
      %p78 = por %p76, %p77
      %p79 = scmp.ne.s32.totalorder %s71, %s73
      %p80 = scmp.eq.s32.totalorder %s21, 1
      %p81 = por %p79, %p80
      %p82 = scmp.ne.s32.totalorder %s73, %s74
      %p83 = scmp.eq.s32.totalorder %s21, 0
      %p84 = por %p82, %p83
      %p85 = scmp.ne.s32.totalorder %s73, %s74
      %p86 = scmp.eq.s32.totalorder %s22, 1
      %p87 = por %p85, %p86
      %p89 = scmp.ne.s32.totalorder %s74, %s88
      %p90 = scmp.eq.s32.totalorder %s22, 0
      %p91 = por %p89, %p90
      %s93 = sadd.s32 %s92, 1
      %p96 = scmp.eq.s32.totalorder %s16, 1
      %p97 = scmp.ne.s32.totalorder %s92, %s94
      %p98 = scmp.eq.s32.totalorder %s16, 0
      %p99 = por %p97, %p98
      %p100 = scmp.ne.s32.totalorder %s92, %s94
      %p101 = scmp.eq.s32.totalorder %s21, 1
      %p102 = por %p100, %p101
      %p103 = scmp.ne.s32.totalorder %s94, %s95
      %p104 = scmp.eq.s32.totalorder %s21, 0
      %p105 = por %p103, %p104
      %p106 = scmp.ne.s32.totalorder %s94, %s95
      %p107 = scmp.eq.s32.totalorder %s22, 1
      %p108 = por %p106, %p107
      %p110 = scmp.ne.s32.totalorder %s95, %s109
      %p111 = scmp.eq.s32.totalorder %s22, 0
      %p112 = por %p110, %p111
      %s113 = ssub.s32 %s16, %s23
      %p114 = scmp.eq.s32.totalorder %s113, 0
      %s116 = sadd.s32 %s115, 1
      %s117 = scalar_select %p114, %s115, %s116
      %p120 = pneg %p114
      %p121 = scmp.eq.s32.totalorder %s16, 1
      %p122 = por %p120, %p121
      %p123 = scmp.ne.s32.totalorder %s115, %s118
      %p124 = scmp.eq.s32.totalorder %s16, 0
      %p125 = por %p123, %p124
      %p126 = scmp.ne.s32.totalorder %s115, %s118
      %p127 = scmp.eq.s32.totalorder %s21, 1
      %p128 = por %p126, %p127
      %p129 = scmp.ne.s32.totalorder %s118, %s119
      %p130 = scmp.eq.s32.totalorder %s21, 0
      %p131 = por %p129, %p130
      %p132 = scmp.ne.s32.totalorder %s118, %s119
      %p133 = scmp.eq.s32.totalorder %s22, 1
      %p134 = por %p132, %p133
      %p136 = scmp.ne.s32.totalorder %s119, %s135
      %p137 = scmp.eq.s32.totalorder %s22, 0
      %p138 = por %p136, %p137
      %p139 = scmp.le.s32.totalorder 1, %s16
      %p140 = scmp.lt.s32.totalorder %s16, 3
      %p141 = pnand %p139, %p140
      %p142 = pneg %p141
      // Predicated region
      $region9: #{tpu_custom_call.1} parent=5 // pred_check
        _
      $region10: #{tpu_custom_call.1} parent=5 // pred_check_branch
        %144 = sbr.rel (%p141) target = $region12
      $region11: #{tpu_custom_call.1} parent=5 // pred_region
        %s145 = ssub.s32 %s16, 1
        // Predicated region
        $region13: #{tpu_custom_call.1} parent=11 // pred_check
          %p146 = pneg %p63
        $region14: #{tpu_custom_call.1} parent=11 // pred_check_branch
          %148 = sbr.rel (%p146) target = $region16
        $region15: #{tpu_custom_call.1} parent=11 // pred_region
          _
        $region16: #{tpu_custom_call.1} parent=11 // pred_fallthru
          _
        // Predicated region
        $region17: #{tpu_custom_call.1} parent=11 // pred_check
          %p149 = pneg %p84
        $region18: #{tpu_custom_call.1} parent=11 // pred_check_branch
          %151 = sbr.rel (%p149) target = $region20
        $region19: #{tpu_custom_call.1} parent=11 // pred_region
          _
        $region20: #{tpu_custom_call.1} parent=11 // pred_fallthru
          _
        // Predicated region
        $region21: #{tpu_custom_call.1} parent=11 // pred_check
          %p152 = pneg %p105
        $region22: #{tpu_custom_call.1} parent=11 // pred_check_branch
          %154 = sbr.rel (%p152) target = $region24
        $region23: #{tpu_custom_call.1} parent=11 // pred_region
          _
        $region24: #{tpu_custom_call.1} parent=11 // pred_fallthru
          _
      $region12: #{tpu_custom_call.1} parent=5 // pred_fallthru
        _
      %p155 = scmp.lt.s32.totalorder %s16, 2
      // Predicated region
      $region25: #{tpu_custom_call.1} parent=5 // pred_check
        %p156 = pneg %p155
      $region26: #{tpu_custom_call.1} parent=5 // pred_check_branch
        %158 = sbr.rel (%p156) target = $region28
      $region27: #{tpu_custom_call.1} parent=5 // pred_region
        // Predicated region
        $region29: #{tpu_custom_call.1} parent=27 // pred_check
          %p159 = pneg %p36
        $region30: #{tpu_custom_call.1} parent=27 // pred_check_branch
          %161 = sbr.rel (%p159) target = $region32
        $region31: #{tpu_custom_call.1} parent=27 // pred_region
          %s162 = sand.u32 %s26, 1
          %s163 = scalar_lea.sflag [#allocation3], %s162
          %s164 = sand.u32 %s26, 1
          %s165 = smul.addr %s164, 80
          %s166 = scalar_lea.vmem [#allocation2], %s165
          %s167 = smul.u32 2, %s16
          %169 = vsyncadd %s163, 0
          %s170 = smul.addr %s167, 8
          %s171 = scalar_lea.hbm %s0, %s170
          %s172 = sshll.u32 %s171, 4
          %s173 = int_to_ptr.hbm [resolvable:$true] %s172
          %s174 = sshll.u32 %s166, 4
          %s175 = int_to_ptr.vmem [resolvable:$true] %s174
          %180 = dma.hbm_to_vmem [thread:$0]  %s173, 1280, %s175, %s163, 512, 256, 16
        $region32: #{tpu_custom_call.1} parent=27 // pred_fallthru
          _
      $region28: #{tpu_custom_call.1} parent=5 // pred_fallthru
        _
      %p181 = scmp.le.s32.totalorder 1, %s16
      %p182 = scmp.lt.s32.totalorder %s16, 3
      %p183 = pnand %p181, %p182
      %p184 = pneg %p183
      // Predicated region
      $region33: #{tpu_custom_call.1} parent=5 // pred_check
        _
      $region34: #{tpu_custom_call.1} parent=5 // pred_check_branch
        %186 = sbr.rel (%p183) target = $region36
      $region35: #{tpu_custom_call.1} parent=5 // pred_region
        %s187 = ssub.s32 %s16, 1
        %s188 = sand.u32 %s29, 1
        %s189 = scalar_lea.sflag [#allocation3], %s188
        %s190 = sand.u32 %s29, 1
        %s191 = smul.addr %s190, 80
        %s192 = scalar_lea.vmem [#allocation2], %s191
        // Predicated region
        $region37: #{tpu_custom_call.1} parent=35 // pred_check
          %p193 = pneg %p42
        $region38: #{tpu_custom_call.1} parent=35 // pred_check_branch
          %195 = sbr.rel (%p193) target = $region40
        $region39: #{tpu_custom_call.1} parent=35 // pred_region
          %197 = dma.done %s189, 1280
        $region40: #{tpu_custom_call.1} parent=35 // pred_fallthru
          _
        %s198 = sand.u32 %s29, 1
        %s199 = scalar_lea.sflag [#allocation3], %s198
        %s200 = sand.u32 %s29, 1
        %s201 = smul.addr %s200, 80
        %s202 = scalar_lea.vmem [#allocation2], %s201
        %p203 = pneg %p42
        %p204 = pneg %p39
        %p205 = pneg %p63
        %p206 = pneg %p60
        %p207 = pneg %p84
        %p208 = pneg %p81
        %p209 = pneg %p105
        %p210 = pneg %p102
        %p211 = pneg %p131
        %p212 = pneg %p128
        %s213 = sand.u32 %s118, 1
        %s214 = scalar_lea.sflag [#allocation4], %s213
        %s215 = sand.u32 %s118, 1
        %s216 = smul.addr %s215, 2
        %s217 = scalar_lea.vmem [#allocation5], %s216
        %s218 = smul.u32 2, %s21
        %s219 = smul.u32 2, %s21
        %v220 = vld [vmem:[%s1] sm:$0xff]
        %v221 = vld [vmem:[%s1 + $0x8] sm:$0xff]
        %v222 = vld [vmem:[%s1 + $0x10] sm:$0x7]
        %v223 = vld [vmem:[%s192] sm:$0xff]
        %v224 = vld [vmem:[%s192 + $0x8] sm:$0xff]
        %v225 = vld [vmem:[%s192 + $0x10] sm:$0xff]
        %v226 = vld [vmem:[%s192 + $0x18] sm:$0xff]
        %v227 = vld [vmem:[%s192 + $0x20] sm:$0xff]
        %v228 = vld [vmem:[%s192 + $0x28] sm:$0xff]
        %v229 = vld [vmem:[%s192 + $0x30] sm:$0xff]
        %v230 = vld [vmem:[%s192 + $0x38] sm:$0xff]
        %v231 = vld [vmem:[%s192 + $0x40] sm:$0xf]
        %v232 = vld [vmem:[%s192 + $0x48] sm:$0xf]
        %v233 = vld [vmem:[%s2] sm:$0xff]
        %v234 = vld [vmem:[%s2 + $0x8] sm:$0xff]
        %v235 = vld [vmem:[%s2 + $0x10] sm:$0x7]
        %237 = vset.pattern.permute.xlu0 0
        %238 = vperm.xlu0 %237, %v233
        %v239 = vpop.permute.xlu0 %238
        %242 = vset.pattern.permute.xlu0 0
        %243 = vperm.xlu0 %242, %v234
        %v244 = vpop.permute.xlu0 %243
        %247 = vset.pattern.permute.xlu0 0
        %248 = vperm.xlu0 %247, %v235
        %v249 = vpop.permute.xlu0 %248
        %vm251 = vcmask 293888
        %v253 = vsel %vm251, %v220, 0
        %v256 = vsel %vm251, %v221, 0
        %v259 = vsel %vm251, %v222, 0
        %vm261 = vcmask 1043456
        %v263 = vsel %vm261, %v231, 0
        %v266 = vsel %vm261, %v232, 0
        %268 = vmatpush.msra.mxu0 0.0
        %269 = vmatpush.msra.mxu0 0.0
        %270 = vmatpush.msra.mxu0 0.0
        %271 = vmatpush.msra.mxu0 0.0
        %272 = vmatpush.msra.mxu0 0.0
        %273 = vmatpush.msra.mxu0 0.0
        %274 = vmatpush.msra.mxu0 0.0
        %275 = vmatpush.msra.mxu0 0.0
        %276 = vmatpush.msra.mxu0 0.0
        %277 = vmatpush.msra.mxu0 0.0
        %278 = vmatpush.msra.mxu0 0.0
        %279 = vmatpush.msra.mxu0 %v263
        %280 = vmatpush.msra.mxu0 %v229
        %281 = vmatpush.msra.mxu0 %v227
        %282 = vmatpush.msra.mxu0 %v225
        %283 = vmatpush.msra.mxu0 %v223
        %284 = vmatmul.f32.gmra.mxu0 %v253
        %v285 = vpop.f32.mrf.mxu0
        %v286 = vadd.f32 %v239, %v285
        %287 = vmatmul.f32.gmra.mxu0 %v256
        %v288 = vpop.f32.mrf.mxu0
        %v289 = vadd.f32 %v244, %v288
        %290 = vmatmul.f32.gmra.mxu0 %v259
        %v291 = vpop.f32.mrf.mxu0
        %v292 = vadd.f32 %v249, %v291
        %293 = vdwg.mxu0
        %294 = vmatpush.msra.mxu0 0.0
        %295 = vmatpush.msra.mxu0 0.0
        %296 = vmatpush.msra.mxu0 0.0
        %297 = vmatpush.msra.mxu0 0.0
        %298 = vmatpush.msra.mxu0 0.0
        %299 = vmatpush.msra.mxu0 0.0
        %300 = vmatpush.msra.mxu0 0.0
        %301 = vmatpush.msra.mxu0 0.0
        %302 = vmatpush.msra.mxu0 0.0
        %303 = vmatpush.msra.mxu0 0.0
        %304 = vmatpush.msra.mxu0 0.0
        %305 = vmatpush.msra.mxu0 %v266
        %306 = vmatpush.msra.mxu0 %v230
        %307 = vmatpush.msra.mxu0 %v228
        %308 = vmatpush.msra.mxu0 %v226
        %309 = vmatpush.msra.mxu0 %v224
        %310 = vmatmul.f32.gmra.mxu0 %v253
        %v311 = vpop.f32.mrf.mxu0
        %v312 = vadd.f32 %v239, %v311
        %313 = vmatmul.f32.gmra.mxu0 %v256
        %v314 = vpop.f32.mrf.mxu0
        %v315 = vadd.f32 %v244, %v314
        %316 = vmatmul.f32.gmra.mxu0 %v259
        %v317 = vpop.f32.mrf.mxu0
        %v318 = vadd.f32 %v249, %v317
        %319 = vdwg.mxu0
        %v320 = vmax.f32 %v286, 0.0
        %v321 = vmax.f32 %v312, 0.0
        %v322 = vmax.f32 %v289, 0.0
        %v323 = vmax.f32 %v315, 0.0
        %v324 = vmax.f32 %v292, 0.0
        %v325 = vmax.f32 %v318, 0.0
        %v326 = vld [vmem:[%s3] sm:$0x1]
        %vm327 = vcmask 154624
        %v329 = vsel %vm327, %v326, 0
        %vm331 = vcmask 1042432
        %v333 = vsel %vm331, %v324, 0
        %v336 = vsel %vm331, %v325, 0
        %338 = vmatpush.msra.mxu0 0.0
        %339 = vmatpush.msra.mxu0 0.0
        %340 = vmatpush.msra.mxu0 0.0
        %341 = vmatpush.msra.mxu0 0.0
        %342 = vmatpush.msra.mxu0 0.0
        %343 = vmatpush.msra.mxu0 0.0
        %344 = vmatpush.msra.mxu0 0.0
        %345 = vmatpush.msra.mxu0 0.0
        %346 = vmatpush.msra.mxu0 0.0
        %347 = vmatpush.msra.mxu0 0.0
        %348 = vmatpush.msra.mxu0 0.0
        %349 = vmatpush.msra.mxu0 0.0
        %350 = vmatpush.msra.mxu0 0.0
        %351 = vmatpush.msra.mxu0 %v333
        %352 = vmatpush.msra.mxu0 %v322
        %353 = vmatpush.msra.mxu0 %v320
        %354 = vmatmul.f32.gmra.mxu0 %v329
        %v355 = vpop.f32.mrf.mxu0
        %v356 = vadd.f32 0.0, %v355
        %357 = vdwg.mxu0
        %358 = vmatpush.msra.mxu0 0.0
        %359 = vmatpush.msra.mxu0 0.0
        %360 = vmatpush.msra.mxu0 0.0
        %361 = vmatpush.msra.mxu0 0.0
        %362 = vmatpush.msra.mxu0 0.0
        %363 = vmatpush.msra.mxu0 0.0
        %364 = vmatpush.msra.mxu0 0.0
        %365 = vmatpush.msra.mxu0 0.0
        %366 = vmatpush.msra.mxu0 0.0
        %367 = vmatpush.msra.mxu0 0.0
        %368 = vmatpush.msra.mxu0 0.0
        %369 = vmatpush.msra.mxu0 0.0
        %370 = vmatpush.msra.mxu0 0.0
        %371 = vmatpush.msra.mxu0 %v336
        %372 = vmatpush.msra.mxu0 %v323
        %373 = vmatpush.msra.mxu0 %v321
        %374 = vmatmul.f32.gmra.mxu0 %v329
        %v375 = vpop.f32.mrf.mxu0
        %v376 = vadd.f32 0.0, %v375
        %377 = vdwg.mxu0
        %v380 = vrot.slane %v376, 7
        %vm381 = vcmask 1040384
        %v382 = vsel %vm381, %v356, %v380
        %v384 = vlaneseq
        %vm385 = vcmp.ge.s32.totalorder %v384, 0
        %vm386 = vcmp.lt.s32.totalorder %v384, 256
        %vm387 = vmand %vm385, %vm386
        %388 = vst.msk [vmem:[%s217] sm:$0x3] %vm387, %v382
        %s389 = sand.u32 %s118, 1
        %s390 = scalar_lea.sflag [#allocation4], %s389
        %s391 = sand.u32 %s118, 1
        %s392 = smul.addr %s391, 2
        %s393 = scalar_lea.vmem [#allocation5], %s392
        // Predicated region
        $region41: #{tpu_custom_call.1} parent=35 // pred_check
          %p394 = pneg %p128
        $region42: #{tpu_custom_call.1} parent=35 // pred_check_branch
          %396 = sbr.rel (%p394) target = $region44
        $region43: #{tpu_custom_call.1} parent=35 // pred_region
          %s397 = smul.u32 2, %s21
          %399 = vsyncadd %s390, 0
          %s400 = scalar_lea.hbm %s4, %s397
          %s402 = sshll.u32 %s393, 4
          %s403 = int_to_ptr.vmem [resolvable:$true] %s402
          %s404 = sshll.u32 %s400, 4
          %s405 = int_to_ptr.hbm [resolvable:$true] %s404
          %407 = dma.vmem_to_hbm [thread:$0]  %s403, 32, %s405, %s390
        $region44: #{tpu_custom_call.1} parent=35 // pred_fallthru
          _
      $region36: #{tpu_custom_call.1} parent=5 // pred_fallthru
        _
      %p408 = scmp.le.s32.totalorder 2, %s16
      // Predicated region
      $region45: #{tpu_custom_call.1} parent=5 // pred_check
        %p409 = pneg %p408
      $region46: #{tpu_custom_call.1} parent=5 // pred_check_branch
        %411 = sbr.rel (%p409) target = $region48
      $region47: #{tpu_custom_call.1} parent=5 // pred_region
        %s412 = ssub.s32 %s16, 2
        // Predicated region
        $region49: #{tpu_custom_call.1} parent=47 // pred_check
          %p413 = pneg %p134
        $region50: #{tpu_custom_call.1} parent=47 // pred_check_branch
          %415 = sbr.rel (%p413) target = $region52
        $region51: #{tpu_custom_call.1} parent=47 // pred_region
          %s416 = sand.u32 %s119, 1
          %s417 = scalar_lea.sflag [#allocation4], %s416
          %s418 = sand.u32 %s119, 1
          %s419 = smul.addr %s418, 2
          %s420 = scalar_lea.vmem [#allocation5], %s419
          %422 = dma.done %s417, 32
        $region52: #{tpu_custom_call.1} parent=47 // pred_fallthru
          _
      $region48: #{tpu_custom_call.1} parent=5 // pred_fallthru
        _
    $region6: #{tpu_custom_call.1} parent=1 // loop_footer
      %s20 = sadd.s32 1, %s16
    $region7: #{tpu_custom_call.1} parent=1 // loop_footer_branch
      %15 = sbr.rel target = $region3
    $region8: #{tpu_custom_call.1} parent=1 // loop_exit
      _
    %423 = vsyncpa [#allocation3], 1
    %s424 = scalar_lea.sflag [#allocation3], 1
    %425 = vsyncpa %s424, 1
    %426 = vsyncpa [#allocation4], 1
    %s427 = scalar_lea.sflag [#allocation4], 1
    %428 = vsyncpa %s427, 1

</llo_original>
